<compile_context>
chip_gen: v7x
topology: tpu7x:2x2x1
jax: 0.10.0
libtpu: 0.0.40
codegen_flags: <defaults>
</compile_context>

<pallas_src>
import functools

import jax
import jax.numpy as jnp
from jax import lax
from jax.experimental import pallas as pl
from jax.experimental.pallas import tpu as pltpu

EPS = 1e-5


def _pick_m_tile(m, target=1024, align=128):
    """Largest multiple of `align` dividing m that is <= target; else full m."""
    if m <= target or m % align != 0:
        return m
    best = align
    t = align
    while t <= target:
        if m % t == 0:
            best = t
        t += align
    return best


def _pick_c_tile(c, tm, itemsize):
    """Channel tile: sublane-aligned divisor of C sized for ~1 MiB blocks; else full C."""
    align = 8 if itemsize >= 4 else 16  # bf16 packs 2 rows per sublane
    if c % align != 0:
        return c
    cap = min(c, max(align, (1 << 20) // max(1, tm * itemsize)))
    tc = align
    d = align
    while d <= cap:
        if c % d == 0:
            tc = d
        d += align
    # Keep >=2 channel blocks when possible so v7x can shard channels across cores.
    if tc == c and c >= 2 * align and (c // 2) % align == 0:
        tc = c // 2
    return tc


def _bn_kernel(x_ref, gamma_ref, beta_ref, ones_ref, o_ref,
               sum_acc, sq_acc, scale_ref, shift_ref,
               *, inv_count, eps, use_mxu_reduce):
    p = pl.program_id(1)    # 0: stats pass, 1: normalize pass
    nb = pl.program_id(2)   # batch index
    mb = pl.program_id(3)   # spatial (H*W) tile index
    is_first_tile = jnp.logical_and(nb == 0, mb == 0)

    @pl.when(jnp.logical_and(p == 0, is_first_tile))
    def _():
        sum_acc[...] = jnp.zeros_like(sum_acc)
        sq_acc[...] = jnp.zeros_like(sq_acc)

    @pl.when(p == 0)
    def _():
        x = x_ref[0]                              # (tc, tm), native dtype
        if use_mxu_reduce:
            # Per-row sums on the idle MXU: exact bf16 products (x*1), f32 accumulate.
            ones_m = ones_ref[...]                # (tm, 128)
            sum_acc[...] += jnp.dot(x, ones_m, preferred_element_type=jnp.float32)
            sq_acc[...] += jnp.dot(x * x, ones_m, preferred_element_type=jnp.float32)
        else:
            # f32 inputs: plain f32 reduction keeps full stats accuracy.
            xf = x.astype(jnp.float32)
            sum_acc[...] += jnp.sum(xf, axis=1, keepdims=True)
            sq_acc[...] += jnp.sum(xf * xf, axis=1, keepdims=True)

    @pl.when(jnp.logical_and(p == 1, is_first_tile))
    def _():
        s = sum_acc[:, 0:1]                       # (tc, 1)
        ss = sq_acc[:, 0:1]
        mean = s * inv_count
        var = jnp.maximum(ss * inv_count - mean * mean, 0.0)   # cancellation guard
        inv_std = lax.rsqrt(var + eps)
        scale = gamma_ref[...] * inv_std
        scale_ref[...] = scale
        shift_ref[...] = beta_ref[...] - mean * scale

    @pl.when(p == 1)
    def _():
        x = x_ref[0].astype(jnp.float32)
        y = x * scale_ref[...] + shift_ref[...]
        o_ref[0] = y.astype(o_ref.dtype)


def scalar_batchnorm(x_nchw, gamma, beta, *, eps=EPS):
    """Training-mode BatchNorm2d forward. x_nchw: (N, C, H, W); gamma, beta: (C,)."""
    n, c, h, w = x_nchw.shape
    m = h * w
    itemsize = jnp.dtype(x_nchw.dtype).itemsize

    tm = _pick_m_tile(m)
    tc = _pick_c_tile(c, tm, itemsize)
    c_blocks = c // tc
    m_blocks = m // tm

    # MXU reduction only when the products are exact in the MXU's bf16 datapath;
    # a DEFAULT-precision dot on f32 tiles would truncate to bf16 and degrade stats.
    use_mxu_reduce = (x_nchw.dtype == jnp.bfloat16) and (tc % 8 == 0)

    x3 = x_nchw.reshape(n, c, m)                     # free reshape, no transpose
    g2 = gamma.reshape(c, 1).astype(jnp.float32)
    b2 = beta.reshape(c, 1).astype(jnp.float32)
    ones = jnp.ones((tm, 128), dtype=x_nchw.dtype)   # resident MXU-reduction RHS

    kernel = functools.partial(
        _bn_kernel,
        inv_count=1.0 / float(n * m),
        eps=float(eps),
        use_mxu_reduce=use_mxu_reduce,
    )

    out3 = pl.pallas_call(
        kernel,
        out_shape=jax.ShapeDtypeStruct((n, c, m), x_nchw.dtype),
        grid_spec=pltpu.PrefetchScalarGridSpec(
            num_scalar_prefetch=0,
            grid=(c_blocks, 2, n, m_blocks),
            in_specs=[
                # x tiles: the same tiles are read in phase 0 and phase 1.
                pl.BlockSpec((1, tc, tm), lambda ci, p, nb, mb: (nb, ci, mb)),
                # gamma / beta: resident per channel block.
                pl.BlockSpec((tc, 1), lambda ci, p, nb, mb: (ci, 0)),
                pl.BlockSpec((tc, 1), lambda ci, p, nb, mb: (ci, 0)),
                # ones matrix for the MXU reduction: resident (constant index).
                pl.BlockSpec((tm, 128), lambda ci, p, nb, mb: (0, 0)),
            ],
            # Phase 0 pins the output window on the block phase 1 writes first,
            # so no output block is copied back to HBM before the kernel wrote it.
            out_specs=pl.BlockSpec(
                (1, tc, tm), lambda ci, p, nb, mb: (p * nb, ci, p * mb)),
            scratch_shapes=[
                pltpu.VMEM((tc, 128), jnp.float32),  # per-channel sum accumulator
                pltpu.VMEM((tc, 128), jnp.float32),  # per-channel sum-sq accumulator
                pltpu.VMEM((tc, 1), jnp.float32),    # fused scale = gamma * inv_std
                pltpu.VMEM((tc, 1), jnp.float32),    # fused shift = beta - mean*scale
            ],
        ),
        compiler_params=pltpu.CompilerParams(
            # Channel blocks are independent -> shard across v7x's 2 TensorCores;
            # phase / batch / spatial carry the accumulator -> arbitrary.
            dimension_semantics=("parallel", "arbitrary", "arbitrary", "arbitrary"),
            # Generation-safe budget (fits v7x's 64 MiB physical VMEM); the tile
            # plan uses well under 2 MiB including double buffers.
            vmem_limit_bytes=32 << 20,
        ),
    )(x3, g2, b2, ones)

    return out3.reshape(n, c, h, w)


def _reference(x_nchw, gamma, beta, eps=EPS):
    xf = x_nchw.astype(jnp.float32)
    mean = jnp.mean(xf, axis=(0, 2, 3), keepdims=True)
    var = jnp.mean((xf - mean) ** 2, axis=(0, 2, 3), keepdims=True)
    y = (xf - mean) / jnp.sqrt(var + eps)
    return y * gamma.reshape(1, -1, 1, 1) + beta.reshape(1, -1, 1, 1)


if __name__ == "__main__":
    key = jax.random.PRNGKey(0)
    kx, kg, kb = jax.random.split(key, 3)

    N, C, H, W = 2, 8, 16, 16
    x = jax.random.normal(kx, (N, C, H, W), dtype=jnp.float32)
    # PyTorch init would be gamma=1, beta=0; use nontrivial deterministic values.
    gamma = 1.0 + 0.1 * jax.random.normal(kg, (C,), dtype=jnp.float32)
    beta = 0.1 * jax.random.normal(kb, (C,), dtype=jnp.float32)

    # f32 path (plain f32 reduction inside the kernel).
    out = jax.block_until_ready(scalar_batchnorm(x, gamma, beta))
    ref = _reference(x, gamma, beta)
    assert out.shape == (N, C, H, W)
    assert jnp.allclose(out, ref, atol=1e-4, rtol=1e-4)

    # bf16 path (MXU-ones reduction inside the kernel).
    xb = x.astype(jnp.bfloat16)
    outb = jax.block_until_ready(scalar_batchnorm(xb, gamma, beta))
    refb = _reference(xb, gamma, beta)
    assert outb.dtype == jnp.bfloat16
    assert jnp.allclose(outb.astype(jnp.float32), refb, atol=3e-2, rtol=3e-2)

    print("KERNEL_OK")
</pallas_src>

<mosaic_0001>
module attributes {stable_mosaic.version = 11 : i64} {
  func.func @_bn_kernel(%arg0: i32, %arg1: i32, %arg2: i32, %arg3: i32, %arg4: memref<1x8x256xf32, #tpu.memory_space<vmem>>, %arg5: memref<8x1xf32, #tpu.memory_space<vmem>>, %arg6: memref<8x1xf32, #tpu.memory_space<vmem>>, %arg7: memref<256x128xf32, #tpu.memory_space<vmem>>, %arg8: memref<1x8x256xf32, #tpu.memory_space<vmem>>, %arg9: memref<8x128xf32, #tpu.memory_space<vmem>>, %arg10: memref<8x128xf32, #tpu.memory_space<vmem>>, %arg11: memref<8x1xf32, #tpu.memory_space<vmem>>, %arg12: memref<8x1xf32, #tpu.memory_space<vmem>>) attributes {dimension_semantics = [#tpu.dimension_semantics<parallel>, #tpu.dimension_semantics<arbitrary>, #tpu.dimension_semantics<arbitrary>, #tpu.dimension_semantics<arbitrary>], iteration_bounds = array<i64: 1, 2, 2, 1>, scalar_prefetch = 0 : i64, scratch_operands = 4 : i64, tpu.core_type = #tpu.core_type<tc>, window_params = [{transform_indices = @transform_0, window_bounds = array<i64: 1, 8, 256>}, {transform_indices = @transform_1, window_bounds = array<i64: 8, 1>}, {transform_indices = @transform_2, window_bounds = array<i64: 8, 1>}, {pipeline_mode = #tpu.pipeline_mode<synchronous>, transform_indices = @transform_3, window_bounds = array<i64: 256, 128>}, {transform_indices = @transform_4, window_bounds = array<i64: 1, 8, 256>}]} {
    %c0_i32 = arith.constant 0 : i32
    %0 = arith.cmpi eq, %arg2, %c0_i32 : i32
    %c0_i32_0 = arith.constant 0 : i32
    %1 = arith.cmpi eq, %arg3, %c0_i32_0 : i32
    %2 = arith.andi %0, %1 : i1
    %c0_i32_1 = arith.constant 0 : i32
    %3 = arith.cmpi eq, %arg1, %c0_i32_1 : i32
    %4 = arith.andi %3, %2 : i1
    %5 = arith.extui %4 : i1 to i32
    %c0_i32_2 = arith.constant 0 : i32
    %6 = arith.cmpi ne, %5, %c0_i32_2 : i32
    scf.if %6 {
      %cst = arith.constant 0.000000e+00 : f32
      %17 = vector.broadcast %cst : f32 to vector<8x128xf32>
      %c0 = arith.constant 0 : index
      %c0_8 = arith.constant 0 : index
      %18 = vector.load %arg9[%c0, %c0_8] : memref<8x128xf32, #tpu.memory_space<vmem>>, vector<8x128xf32>
      tpu.vector_store %arg9[%c0, %c0_8], %17 {strides = array<i32>} : memref<8x128xf32, #tpu.memory_space<vmem>>, vector<8x128xf32>,
      %cst_9 = arith.constant 0.000000e+00 : f32
      %19 = vector.broadcast %cst_9 : f32 to vector<8x128xf32>
      %c0_10 = arith.constant 0 : index
      %c0_11 = arith.constant 0 : index
      %20 = vector.load %arg10[%c0_10, %c0_11] : memref<8x128xf32, #tpu.memory_space<vmem>>, vector<8x128xf32>
      tpu.vector_store %arg10[%c0_10, %c0_11], %19 {strides = array<i32>} : memref<8x128xf32, #tpu.memory_space<vmem>>, vector<8x128xf32>,
    } else {
    }
    %c0_i32_3 = arith.constant 0 : i32
    %7 = arith.cmpi eq, %arg1, %c0_i32_3 : i32
    %8 = arith.extui %7 : i1 to i32
    %c0_i32_4 = arith.constant 0 : i32
    %9 = arith.cmpi ne, %8, %c0_i32_4 : i32
    scf.if %9 {
      %c0 = arith.constant 0 : index
      %c0_8 = arith.constant 0 : index
      %c0_9 = arith.constant 0 : index
      %17 = vector.load %arg4[%c0, %c0_8, %c0_9] : memref<1x8x256xf32, #tpu.memory_space<vmem>>, vector<1x8x256xf32>
      %18 = vector.shape_cast %17 : vector<1x8x256xf32> to vector<8x256xf32>
      %c0_10 = arith.constant 0 : index
      %c0_11 = arith.constant 0 : index
      %19 = vector.load %arg9[%c0_10, %c0_11] : memref<8x128xf32, #tpu.memory_space<vmem>>, vector<8x128xf32>
      %cst = arith.constant dense<0.000000e+00> : vector<8xf32>
      %20 = vector.multi_reduction <add>, %18, %cst [1] : vector<8x256xf32> to vector<8xf32>
      %21 = vector.shape_cast %20 : vector<8xf32> to vector<8x1xf32>
      %22 = vector.broadcast %21 : vector<8x1xf32> to vector<8x128xf32>
      %23 = arith.addf %19, %22 : vector<8x128xf32>
      %c0_12 = arith.constant 0 : index
      %c0_13 = arith.constant 0 : index
      %24 = vector.load %arg9[%c0_12, %c0_13] : memref<8x128xf32, #tpu.memory_space<vmem>>, vector<8x128xf32>
      tpu.vector_store %arg9[%c0_12, %c0_13], %23 {strides = array<i32>} : memref<8x128xf32, #tpu.memory_space<vmem>>, vector<8x128xf32>,
      %c0_14 = arith.constant 0 : index
      %c0_15 = arith.constant 0 : index
      %25 = vector.load %arg10[%c0_14, %c0_15] : memref<8x128xf32, #tpu.memory_space<vmem>>, vector<8x128xf32>
      %26 = arith.mulf %18, %18 : vector<8x256xf32>
      %cst_16 = arith.constant dense<0.000000e+00> : vector<8xf32>
      %27 = vector.multi_reduction <add>, %26, %cst_16 [1] : vector<8x256xf32> to vector<8xf32>
      %28 = vector.shape_cast %27 : vector<8xf32> to vector<8x1xf32>
      %29 = vector.broadcast %28 : vector<8x1xf32> to vector<8x128xf32>
      %30 = arith.addf %25, %29 : vector<8x128xf32>
      %c0_17 = arith.constant 0 : index
      %c0_18 = arith.constant 0 : index
      %31 = vector.load %arg10[%c0_17, %c0_18] : memref<8x128xf32, #tpu.memory_space<vmem>>, vector<8x128xf32>
      tpu.vector_store %arg10[%c0_17, %c0_18], %30 {strides = array<i32>} : memref<8x128xf32, #tpu.memory_space<vmem>>, vector<8x128xf32>,
    } else {
    }
    %c1_i32 = arith.constant 1 : i32
    %10 = arith.cmpi eq, %arg1, %c1_i32 : i32
    %11 = arith.andi %10, %2 : i1
    %12 = arith.extui %11 : i1 to i32
    %c0_i32_5 = arith.constant 0 : i32
    %13 = arith.cmpi ne, %12, %c0_i32_5 : i32
    scf.if %13 {
      %c0 = arith.constant 0 : index
      %c0_8 = arith.constant 0 : index
      %17 = vector.load %arg9[%c0, %c0_8] : memref<8x128xf32, #tpu.memory_space<vmem>>, vector<8x1xf32>
      %c0_9 = arith.constant 0 : index
      %c0_10 = arith.constant 0 : index
      %18 = vector.load %arg10[%c0_9, %c0_10] : memref<8x128xf32, #tpu.memory_space<vmem>>, vector<8x1xf32>
      %cst = arith.constant 0.001953125 : f32
      %19 = vector.broadcast %cst : f32 to vector<8x1xf32>
      %20 = arith.mulf %17, %19 : vector<8x1xf32>
      %cst_11 = arith.constant 0.001953125 : f32
      %21 = vector.broadcast %cst_11 : f32 to vector<8x1xf32>
      %22 = arith.mulf %18, %21 : vector<8x1xf32>
      %23 = arith.mulf %20, %20 : vector<8x1xf32>
      %24 = arith.subf %22, %23 : vector<8x1xf32>
      %cst_12 = arith.constant 0.000000e+00 : f32
      %25 = vector.broadcast %cst_12 : f32 to vector<8x1xf32>
      %26 = arith.maximumf %24, %25 : vector<8x1xf32>
      %cst_13 = arith.constant 9.99999974E-6 : f32
      %27 = vector.broadcast %cst_13 : f32 to vector<8x1xf32>
      %28 = arith.addf %26, %27 : vector<8x1xf32>
      %29 = math.rsqrt %28 : vector<8x1xf32>
      %c0_14 = arith.constant 0 : index
      %c0_15 = arith.constant 0 : index
      %30 = vector.load %arg5[%c0_14, %c0_15] : memref<8x1xf32, #tpu.memory_space<vmem>>, vector<8x1xf32>
      %31 = arith.mulf %30, %29 : vector<8x1xf32>
      %c0_16 = arith.constant 0 : index
      %c0_17 = arith.constant 0 : index
      %32 = vector.load %arg11[%c0_16, %c0_17] : memref<8x1xf32, #tpu.memory_space<vmem>>, vector<8x1xf32>
      tpu.vector_store %arg11[%c0_16, %c0_17], %31 {strides = array<i32>} : memref<8x1xf32, #tpu.memory_space<vmem>>, vector<8x1xf32>,
      %c0_18 = arith.constant 0 : index
      %c0_19 = arith.constant 0 : index
      %33 = vector.load %arg6[%c0_18, %c0_19] : memref<8x1xf32, #tpu.memory_space<vmem>>, vector<8x1xf32>
      %34 = arith.mulf %20, %31 : vector<8x1xf32>
      %35 = arith.subf %33, %34 : vector<8x1xf32>
      %c0_20 = arith.constant 0 : index
      %c0_21 = arith.constant 0 : index
      %36 = vector.load %arg12[%c0_20, %c0_21] : memref<8x1xf32, #tpu.memory_space<vmem>>, vector<8x1xf32>
      tpu.vector_store %arg12[%c0_20, %c0_21], %35 {strides = array<i32>} : memref<8x1xf32, #tpu.memory_space<vmem>>, vector<8x1xf32>,
    } else {
    }
    %c1_i32_6 = arith.constant 1 : i32
    %14 = arith.cmpi eq, %arg1, %c1_i32_6 : i32
    %15 = arith.extui %14 : i1 to i32
    %c0_i32_7 = arith.constant 0 : i32
    %16 = arith.cmpi ne, %15, %c0_i32_7 : i32
    scf.if %16 {
      %c0 = arith.constant 0 : index
      %c0_8 = arith.constant 0 : index
      %c0_9 = arith.constant 0 : index
      %17 = vector.load %arg4[%c0, %c0_8, %c0_9] : memref<1x8x256xf32, #tpu.memory_space<vmem>>, vector<1x8x256xf32>
      %18 = vector.shape_cast %17 : vector<1x8x256xf32> to vector<8x256xf32>
      %c0_10 = arith.constant 0 : index
      %c0_11 = arith.constant 0 : index
      %19 = vector.load %arg11[%c0_10, %c0_11] : memref<8x1xf32, #tpu.memory_space<vmem>>, vector<8x1xf32>
      %20 = vector.broadcast %19 : vector<8x1xf32> to vector<8x256xf32>
      %21 = arith.mulf %18, %20 : vector<8x256xf32>
      %c0_12 = arith.constant 0 : index
      %c0_13 = arith.constant 0 : index
      %22 = vector.load %arg12[%c0_12, %c0_13] : memref<8x1xf32, #tpu.memory_space<vmem>>, vector<8x1xf32>
      %23 = vector.broadcast %22 : vector<8x1xf32> to vector<8x256xf32>
      %24 = arith.addf %21, %23 : vector<8x256xf32>
      %c0_14 = arith.constant 0 : index
      %c0_15 = arith.constant 0 : index
      %c0_16 = arith.constant 0 : index
      %25 = vector.load %arg8[%c0_14, %c0_15, %c0_16] : memref<1x8x256xf32, #tpu.memory_space<vmem>>, vector<1x8x256xf32>
      %26 = vector.shape_cast %25 : vector<1x8x256xf32> to vector<8x256xf32>
      %27 = vector.shape_cast %24 : vector<8x256xf32> to vector<1x8x256xf32>
      tpu.vector_store %arg8[%c0_14, %c0_15, %c0_16], %27 {strides = array<i32>} : memref<1x8x256xf32, #tpu.memory_space<vmem>>, vector<1x8x256xf32>,
    } else {
    }
    return
  }
  func.func @transform_0(%arg0: i32, %arg1: i32, %arg2: i32, %arg3: i32) -> (i32, i32, i32) {
    %c0_i32 = arith.constant 0 : i32
    return %arg2, %arg0, %arg3 : i32, i32, i32
  }
  func.func @transform_1(%arg0: i32, %arg1: i32, %arg2: i32, %arg3: i32) -> (i32, i32) {
    %c0_i32 = arith.constant 0 : i32
    %c0_i32_0 = arith.constant 0 : i32
    return %arg0, %c0_i32 : i32, i32
  }
  func.func @transform_2(%arg0: i32, %arg1: i32, %arg2: i32, %arg3: i32) -> (i32, i32) {
    %c0_i32 = arith.constant 0 : i32
    %c0_i32_0 = arith.constant 0 : i32
    return %arg0, %c0_i32 : i32, i32
  }
  func.func @transform_3(%arg0: i32, %arg1: i32, %arg2: i32, %arg3: i32) -> (i32, i32) {
    %c0_i32 = arith.constant 0 : i32
    %c0_i32_0 = arith.constant 0 : i32
    %c0_i32_1 = arith.constant 0 : i32
    return %c0_i32, %c0_i32_0 : i32, i32
  }
  func.func @transform_4(%arg0: i32, %arg1: i32, %arg2: i32, %arg3: i32) -> (i32, i32, i32) {
    %0 = arith.muli %arg1, %arg2 : i32
    %1 = arith.muli %arg1, %arg3 : i32
    %c0_i32 = arith.constant 0 : i32
    return %0, %arg0, %1 : i32, i32, i32
  }
}

</mosaic_0001>

<llo_original>
// kernel: tpu_custom_call.1
$region0: #{tpu_custom_call.1}
  #allocation0 [shape = 'u32[]', space=smem, size = 0x4, offset = 0x4, fixed_abs, tag = 'smem constant byte address 0x4 - core index']
  #allocation1 [shape = 'u32[144,128]{1,0:T(1,128)}', space=vmem, size = 0x12000, scoped, tag = 'internal scratch']
  #allocation2 [shape = 'f32[8,128]{1,0:T(8,128)}', space=vmem, size = 0x1000, scoped, tag = 'scratch operand']
  #allocation3 [shape = 'f32[8,128]{1,0:T(8,128)}', space=vmem, size = 0x1000, scoped, tag = 'scratch operand']
  #allocation4 [shape = 'f32[8,1]{1,0:T(8,128)}', space=vmem, size = 0x1000, scoped, tag = 'scratch operand']
  #allocation5 [shape = 'f32[8,1]{1,0:T(8,128)}', space=vmem, size = 0x1000, scoped, tag = 'scratch operand']
  %s0 = inlined_call_operand.hbm [shape: f32[2,8,256], index: 0, kind: input, shape index: {}]
  %s1 = inlined_call_operand.vmem [shape: f32[8,1], index: 1, kind: input, shape index: {}]
  %s2 = inlined_call_operand.vmem [shape: f32[8,1], index: 2, kind: input, shape index: {}]
  %s3 = inlined_call_operand.hbm [shape: f32[256,128], index: 3, kind: input, shape index: {}]
  %s4 = inlined_call_operand.hbm [shape: f32[2,8,256], index: 4, kind: output, shape index: {}]
  %s5 = sld [smem:[#allocation0]]
  $region73: #{tpu_custom_call.1} parent=0
    _
  %s7 = ssub.s32 1, %s5
  %s8 = scalar_select 0, %s7, %s5
  $region1: #{tpu_custom_call.1} parent=0
    #allocation6 [shape = 'u8[16384]{0}', space=vmem, size = 0x4000, scoped, tag = 'input window, operand 0']
    #allocation7 [shape = 's32[2]{0}', space=sflag, size = 0x8, scoped, tag = 'scoped memory for tpu_custom_call.1']
    #allocation8 [shape = 's32[2]{0}', space=sflag, size = 0x8, scoped, tag = 'scoped memory for tpu_custom_call.1']
    #allocation9 [shape = 'u8[131072]{0}', space=vmem, size = 0x20000, scoped, tag = 'input window, operand 3, single buffered']
    #allocation10 [shape = 's32[1]{0}', space=sflag, size = 0x4, scoped, tag = 'scoped memory for tpu_custom_call.1']
    #allocation11 [shape = 'u8[16384]{0}', space=vmem, size = 0x4000, scoped, tag = 'output window, operand 0']
    %9 = vsyncpa [#allocation7], 0
    %s10 = scalar_lea.sflag [#allocation7], 1
    %11 = vsyncpa %s10, 0
    %12 = vsyncpa [#allocation10], 0
    %13 = vsyncpa [#allocation8], 0
    %s14 = scalar_lea.sflag [#allocation8], 1
    %15 = vsyncpa %s14, 0
    loop: start=0, step=1, limit=6
    $region2: #{tpu_custom_call.1} parent=1 // loop_pre_header
      _
    $region3: #{tpu_custom_call.1} parent=1 // loop_header
      %s17 = sphi 0, %s21
      %p18 = scmp.ge.s32.totalorder %s17, 6
      %s24 = sphi 0, %s50
      %s25 = sphi 0, %s46
      %s26 = sphi 0, %s42
      %s27 = sphi 0, %s38
      %s28 = sphi 0, %s24
      %s29 = sphi 0, %s25
      %s30 = sphi 0, %s26
      %s31 = sphi 0, %s27
      %s32 = sphi 0, %s28
      %s33 = sphi 0, %s29
      %s34 = sphi 0, %s30
      %s35 = sphi 0, %s31
      %s57 = sphi 0, %s59
      %s60 = sphi 0, %s57
      %s61 = sphi 0, %s60
      %s77 = sphi 0, %s61
      %s83 = sphi 0, %s85
      %s86 = sphi 0, %s83
      %s87 = sphi 0, %s86
      %s103 = sphi 0, %s87
      %s109 = sphi 0, %s111
      %s112 = sphi 0, %s109
      %s113 = sphi 0, %s112
      %s129 = sphi 0, %s113
      %s133 = sphi 0, %s133
      %s135 = sphi 0, %s133
      %s136 = sphi 0, %s135
      %s150 = sphi 0, %s136
      %s164 = sphi 0, %s166
      %s167 = sphi 0, %s164
      %s168 = sphi 0, %s167
      %s184 = sphi 0, %s168
    $region4: #{tpu_custom_call.1} parent=1 // loop_header_branch
      %20 = sbr.rel (%p18) target = $region8
    $region5: #{tpu_custom_call.1} parent=1 // loop_body
      %s22 = ssub.s32 %s17, 1
      %s23 = ssub.s32 %s17, 2
      %s36 = sadd.s32 1, %s27
      %p37 = scmp.ge.s32.totalorder %s36, 1
      %s38 = scalar_select %p37, 0, %s36
      %s39 = sadd.s32 1, %s26
      %s40 = scalar_select %p37, %s39, %s26
      %p41 = scmp.ge.s32.totalorder %s40, 2
      %s42 = scalar_select %p41, 0, %s40
      %s43 = sadd.s32 1, %s25
      %s44 = scalar_select %p41, %s43, %s25
      %p45 = scmp.ge.s32.totalorder %s44, 2
      %s46 = scalar_select %p45, 0, %s44
      %s47 = sadd.s32 1, %s24
      %s48 = scalar_select %p45, %s47, %s24
      %p49 = scmp.ge.s32.totalorder %s48, 1
      %s50 = scalar_select %p49, 0, %s48
      %s51 = ssub.s32 %s26, %s42
      %s52 = ssub.s32 %s24, %s50
      %s53 = sor.u32 %s51, %s52
      %s54 = ssub.s32 %s27, %s38
      %s55 = sor.u32 %s53, %s54
      %p56 = scmp.eq.s32.totalorder %s55, 0
      %s58 = sadd.s32 %s57, 1
      %s59 = scalar_select %p56, %s57, %s58
      %p62 = pneg %p56
      %p63 = scmp.eq.s32.totalorder %s17, 3
      %p64 = por %p62, %p63
      %p65 = scmp.ne.s32.totalorder %s57, %s60
      %p66 = scmp.eq.s32.totalorder %s17, 0
      %p67 = por %p65, %p66
      %p68 = scmp.ne.s32.totalorder %s57, %s60
      %p69 = scmp.eq.s32.totalorder %s22, 3
      %p70 = por %p68, %p69
      %p71 = scmp.ne.s32.totalorder %s60, %s61
      %p72 = scmp.eq.s32.totalorder %s22, 0
      %p73 = por %p71, %p72
      %p74 = scmp.ne.s32.totalorder %s60, %s61
      %p75 = scmp.eq.s32.totalorder %s23, 3
      %p76 = por %p74, %p75
      %p78 = scmp.ne.s32.totalorder %s61, %s77
      %p79 = scmp.eq.s32.totalorder %s23, 0
      %p80 = por %p78, %p79
      %s81 = ssub.s32 %s24, %s50
      %p82 = scmp.eq.s32.totalorder %s81, 0
      %s84 = sadd.s32 %s83, 1
      %s85 = scalar_select %p82, %s83, %s84
      %p88 = pneg %p82
      %p89 = scmp.eq.s32.totalorder %s17, 3
      %p90 = por %p88, %p89
      %p91 = scmp.ne.s32.totalorder %s83, %s86
      %p92 = scmp.eq.s32.totalorder %s17, 0
      %p93 = por %p91, %p92
      %p94 = scmp.ne.s32.totalorder %s83, %s86
      %p95 = scmp.eq.s32.totalorder %s22, 3
      %p96 = por %p94, %p95
      %p97 = scmp.ne.s32.totalorder %s86, %s87
      %p98 = scmp.eq.s32.totalorder %s22, 0
      %p99 = por %p97, %p98
      %p100 = scmp.ne.s32.totalorder %s86, %s87
      %p101 = scmp.eq.s32.totalorder %s23, 3
      %p102 = por %p100, %p101
      %p104 = scmp.ne.s32.totalorder %s87, %s103
      %p105 = scmp.eq.s32.totalorder %s23, 0
      %p106 = por %p104, %p105
      %s107 = ssub.s32 %s24, %s50
      %p108 = scmp.eq.s32.totalorder %s107, 0
      %s110 = sadd.s32 %s109, 1
      %s111 = scalar_select %p108, %s109, %s110
      %p114 = pneg %p108
      %p115 = scmp.eq.s32.totalorder %s17, 3
      %p116 = por %p114, %p115
      %p117 = scmp.ne.s32.totalorder %s109, %s112
      %p118 = scmp.eq.s32.totalorder %s17, 0
      %p119 = por %p117, %p118
      %p120 = scmp.ne.s32.totalorder %s109, %s112
      %p121 = scmp.eq.s32.totalorder %s22, 3
      %p122 = por %p120, %p121
      %p123 = scmp.ne.s32.totalorder %s112, %s113
      %p124 = scmp.eq.s32.totalorder %s22, 0
      %p125 = por %p123, %p124
      %p126 = scmp.ne.s32.totalorder %s112, %s113
      %p127 = scmp.eq.s32.totalorder %s23, 3
      %p128 = por %p126, %p127
      %p130 = scmp.ne.s32.totalorder %s113, %s129
      %p131 = scmp.eq.s32.totalorder %s23, 0
      %p132 = por %p130, %p131
      %s134 = sadd.s32 %s133, 1
      %p137 = scmp.eq.s32.totalorder %s17, 3
      %p138 = scmp.ne.s32.totalorder %s133, %s135
      %p139 = scmp.eq.s32.totalorder %s17, 0
      %p140 = por %p138, %p139
      %p141 = scmp.ne.s32.totalorder %s133, %s135
      %p142 = scmp.eq.s32.totalorder %s22, 3
      %p143 = por %p141, %p142
      %p144 = scmp.ne.s32.totalorder %s135, %s136
      %p145 = scmp.eq.s32.totalorder %s22, 0
      %p146 = por %p144, %p145
      %p147 = scmp.ne.s32.totalorder %s135, %s136
      %p148 = scmp.eq.s32.totalorder %s23, 3
      %p149 = por %p147, %p148
      %p151 = scmp.ne.s32.totalorder %s136, %s150
      %p152 = scmp.eq.s32.totalorder %s23, 0
      %p153 = por %p151, %p152
      %s154 = smul.u32 %s25, %s26
      %s155 = smul.u32 %s25, %s27
      %s156 = smul.u32 %s46, %s42
      %s157 = smul.u32 %s46, %s38
      %s158 = ssub.s32 %s154, %s156
      %s159 = ssub.s32 %s24, %s50
      %s160 = sor.u32 %s158, %s159
      %s161 = ssub.s32 %s155, %s157
      %s162 = sor.u32 %s160, %s161
      %p163 = scmp.eq.s32.totalorder %s162, 0
      %s165 = sadd.s32 %s164, 1
      %s166 = scalar_select %p163, %s164, %s165
      %p169 = pneg %p163
      %p170 = scmp.eq.s32.totalorder %s17, 3
      %p171 = por %p169, %p170
      %p172 = scmp.ne.s32.totalorder %s164, %s167
      %p173 = scmp.eq.s32.totalorder %s17, 0
      %p174 = por %p172, %p173
      %p175 = scmp.ne.s32.totalorder %s164, %s167
      %p176 = scmp.eq.s32.totalorder %s22, 3
      %p177 = por %p175, %p176
      %p178 = scmp.ne.s32.totalorder %s167, %s168
      %p179 = scmp.eq.s32.totalorder %s22, 0
      %p180 = por %p178, %p179
      %p181 = scmp.ne.s32.totalorder %s167, %s168
      %p182 = scmp.eq.s32.totalorder %s23, 3
      %p183 = por %p181, %p182
      %p185 = scmp.ne.s32.totalorder %s168, %s184
      %p186 = scmp.eq.s32.totalorder %s23, 0
      %p187 = por %p185, %p186
      %p188 = scmp.le.s32.totalorder 1, %s17
      %p189 = scmp.lt.s32.totalorder %s17, 5
      %p190 = pnand %p188, %p189
      %p191 = pneg %p190
      // Predicated region
      $region9: #{tpu_custom_call.1} parent=5 // pred_check
        _
      $region10: #{tpu_custom_call.1} parent=5 // pred_check_branch
        %193 = sbr.rel (%p190) target = $region12
      $region11: #{tpu_custom_call.1} parent=5 // pred_region
        %s194 = ssub.s32 %s17, 1
        // Predicated region
        $region13: #{tpu_custom_call.1} parent=11 // pred_check
          %p195 = pneg %p99
        $region14: #{tpu_custom_call.1} parent=11 // pred_check_branch
          %197 = sbr.rel (%p195) target = $region16
        $region15: #{tpu_custom_call.1} parent=11 // pred_region
          %p198 = scmp.lt.s32.totalorder %s28, 0
          %s199 = scalar_select %p198, %s28, 0
          %s200 = smul.addr %s199, 8
          %s201 = scalar_lea.vmem %s1, %s200
        $region16: #{tpu_custom_call.1} parent=11 // pred_fallthru
          _
        // Predicated region
        $region17: #{tpu_custom_call.1} parent=11 // pred_check
          %p202 = pneg %p125
        $region18: #{tpu_custom_call.1} parent=11 // pred_check_branch
          %204 = sbr.rel (%p202) target = $region20
        $region19: #{tpu_custom_call.1} parent=11 // pred_region
          %p205 = scmp.lt.s32.totalorder %s28, 0
          %s206 = scalar_select %p205, %s28, 0
          %s207 = smul.addr %s206, 8
          %s208 = scalar_lea.vmem %s2, %s207
        $region20: #{tpu_custom_call.1} parent=11 // pred_fallthru
          _
        // Predicated region
        $region21: #{tpu_custom_call.1} parent=11 // pred_check
          %p209 = pneg %p146
        $region22: #{tpu_custom_call.1} parent=11 // pred_check_branch
          %211 = sbr.rel (%p209) target = $region24
        $region23: #{tpu_custom_call.1} parent=11 // pred_region
          %s213 = ssub.s32 4096, 4096
          %214 = vsyncadd [#allocation10], %s213
          %s215 = sshll.u32 [#allocation9], 4
          %s216 = int_to_ptr.vmem [resolvable:$true] %s215
          %221 = dma.hbm_to_vmem [thread:$0]  %s3, 4096, %s216, [#allocation10], 128, 128, 8
        $region24: #{tpu_custom_call.1} parent=11 // pred_fallthru
          _
      $region12: #{tpu_custom_call.1} parent=5 // pred_fallthru
        _
      %p222 = scmp.lt.s32.totalorder %s17, 4
      // Predicated region
      $region25: #{tpu_custom_call.1} parent=5 // pred_check
        %p223 = pneg %p222
      $region26: #{tpu_custom_call.1} parent=5 // pred_check_branch
        %225 = sbr.rel (%p223) target = $region28
      $region27: #{tpu_custom_call.1} parent=5 // pred_region
        // Predicated region
        $region29: #{tpu_custom_call.1} parent=27 // pred_check
          %p226 = pneg %p67
        $region30: #{tpu_custom_call.1} parent=27 // pred_check_branch
          %228 = sbr.rel (%p226) target = $region32
        $region31: #{tpu_custom_call.1} parent=27 // pred_region
          %s229 = sand.u32 %s57, 1
          %s230 = scalar_lea.sflag [#allocation7], %s229
          %s231 = sand.u32 %s57, 1
          %s232 = smul.addr %s231, 16
          %s233 = scalar_lea.vmem [#allocation6], %s232
          %s234 = smul.u32 2, %s27
          %s236 = ssub.s32 256, 256
          %237 = vsyncadd %s230, %s236
          %s238 = smul.addr %s24, 2
          %s239 = sadd.s32 %s234, %s238
          %s240 = smul.addr %s26, 2
          %s241 = sadd.s32 %s239, %s240
          %s242 = smul.addr %s241, 128
          %s243 = scalar_lea.hbm %s0, %s242
          %s245 = sshll.u32 %s233, 4
          %s246 = int_to_ptr.vmem [resolvable:$true] %s245
          %248 = dma.hbm_to_vmem [thread:$0]  %s243, 256, %s246, %s230
        $region32: #{tpu_custom_call.1} parent=27 // pred_fallthru
          _
      $region28: #{tpu_custom_call.1} parent=5 // pred_fallthru
        _
      %p249 = scmp.le.s32.totalorder 1, %s17
      %p250 = scmp.lt.s32.totalorder %s17, 5
      %p251 = pnand %p249, %p250
      %p252 = pneg %p251
      // Predicated region
      $region33: #{tpu_custom_call.1} parent=5 // pred_check
        _
      $region34: #{tpu_custom_call.1} parent=5 // pred_check_branch
        %254 = sbr.rel (%p251) target = $region36
      $region35: #{tpu_custom_call.1} parent=5 // pred_region
        %s255 = ssub.s32 %s17, 1
        %s256 = sand.u32 %s60, 1
        %s257 = scalar_lea.sflag [#allocation7], %s256
        %s258 = sand.u32 %s60, 1
        %s259 = smul.addr %s258, 16
        %s260 = scalar_lea.vmem [#allocation6], %s259
        // Predicated region
        $region37: #{tpu_custom_call.1} parent=35 // pred_check
          %p261 = pneg %p73
        $region38: #{tpu_custom_call.1} parent=35 // pred_check_branch
          %263 = sbr.rel (%p261) target = $region40
        $region39: #{tpu_custom_call.1} parent=35 // pred_region
          %264 = dma.done %s257, 256
        $region40: #{tpu_custom_call.1} parent=35 // pred_fallthru
          _
        // Predicated region
        $region41: #{tpu_custom_call.1} parent=35 // pred_check
          %p265 = pneg %p146
        $region42: #{tpu_custom_call.1} parent=35 // pred_check_branch
          %267 = sbr.rel (%p265) target = $region44
        $region43: #{tpu_custom_call.1} parent=35 // pred_region
          %268 = dma.done [#allocation10], 4096
        $region44: #{tpu_custom_call.1} parent=35 // pred_fallthru
          _
        %s269 = sand.u32 %s60, 1
        %s270 = scalar_lea.sflag [#allocation7], %s269
        %s271 = sand.u32 %s60, 1
        %s272 = smul.addr %s271, 16
        %s273 = scalar_lea.vmem [#allocation6], %s272
        %p274 = pneg %p73
        %p275 = pneg %p70
        %p276 = scmp.lt.s32.totalorder %s28, 0
        %s277 = scalar_select %p276, %s28, 0
        %s278 = smul.addr %s277, 8
        %s279 = scalar_lea.vmem %s1, %s278
        %p280 = pneg %p99
        %p281 = pneg %p96
        %p282 = scmp.lt.s32.totalorder %s28, 0
        %s283 = scalar_select %p282, %s28, 0
        %s284 = smul.addr %s283, 8
        %s285 = scalar_lea.vmem %s2, %s284
        %p286 = pneg %p125
        %p287 = pneg %p122
        %p288 = pneg %p146
        %p289 = pneg %p143
        %p290 = pneg %p180
        %p291 = pneg %p177
        %s292 = sand.u32 %s167, 1
        %s293 = scalar_lea.sflag [#allocation8], %s292
        %s294 = sand.u32 %s167, 1
        %s295 = smul.addr %s294, 16
        %s296 = scalar_lea.vmem [#allocation11], %s295
        %s297 = smul.u32 2, %s31
        %p298 = scmp.lt.s32.totalorder %s28, 0
        %s299 = scalar_select %p298, %s28, 0
        %s300 = smul.addr %s299, 8
        %s301 = scalar_lea.vmem %s1, %s300
        %p302 = scmp.lt.s32.totalorder %s28, 0
        %s303 = scalar_select %p302, %s28, 0
        %s304 = smul.addr %s303, 8
        %s305 = scalar_lea.vmem %s2, %s304
        %s306 = smul.u32 %s29, %s30
        %s307 = smul.u32 %s29, %s31
        %s308 = smul.u32 2, %s307
        %p309 = scmp.eq.s32.totalorder %s30, 0
        %p310 = scmp.eq.s32.totalorder %s31, 0
        %p311 = pnand %p309, %p310
        %p312 = pneg %p311
        %p313 = scmp.eq.s32.totalorder %s29, 0
        %p314 = pnand %p313, %p312
        %p315 = pneg %p314
        // Predicated region
        $region45: #{tpu_custom_call.1} parent=35 // pred_check
          _
        $region46: #{tpu_custom_call.1} parent=35 // pred_check_branch
          %317 = sbr.rel (%p314) target = $region48
        $region47: #{tpu_custom_call.1} parent=35 // pred_region
          %318 = vst [vmem:[#allocation2] sm:$0xff] 0.0
          %319 = vst [vmem:[#allocation3] sm:$0xff] 0.0
        $region48: #{tpu_custom_call.1} parent=35 // pred_fallthru
          _
        // Predicated region
        $region49: #{tpu_custom_call.1} parent=35 // pred_check
          %p320 = pneg %p313
        $region50: #{tpu_custom_call.1} parent=35 // pred_check_branch
          %322 = sbr.rel (%p320) target = $region52
        $region51: #{tpu_custom_call.1} parent=35 // pred_region
          %v323 = vld [vmem:[%s260] sm:$0xff]
          %v324 = vld [vmem:[%s260 + $0x8] sm:$0xff]
          %v325 = vld [vmem:[#allocation2] sm:$0xff]
          %v326 = vadd.f32 %v323, %v324
          %327 = vadd.xlane.f32.xlu0 %v326
          %v328 = vpop.xlane.xlu0 %327
          %v329 = vadd.f32 %v325, %v328
          %330 = vst [vmem:[#allocation2] sm:$0xff] %v329
          %v331 = vld [vmem:[#allocation3] sm:$0xff]
          %v332 = vmul.f32 %v323, %v323
          %v333 = vmul.f32 %v324, %v324
          %v334 = vadd.f32 %v332, %v333
          %335 = vadd.xlane.f32.xlu0 %v334
          %v336 = vpop.xlane.xlu0 %335
          %v337 = vadd.f32 %v331, %v336
          %338 = vst [vmem:[#allocation3] sm:$0xff] %v337
        $region52: #{tpu_custom_call.1} parent=35 // pred_fallthru
          _
        %p339 = scmp.eq.s32.totalorder %s29, 1
        %p340 = pnand %p339, %p312
        %p341 = pneg %p340
        // Predicated region
        $region53: #{tpu_custom_call.1} parent=35 // pred_check
          _
        $region54: #{tpu_custom_call.1} parent=35 // pred_check_branch
          %343 = sbr.rel (%p340) target = $region56
        $region55: #{tpu_custom_call.1} parent=35 // pred_region
          %v344 = vld [vmem:[#allocation2] sm:$0xff]
          %v345 = vld [vmem:[#allocation3] sm:$0xff]
          %v346 = vmul.f32 %v344, 0.001953125
          %v347 = vmul.f32 %v345, 0.001953125
          %v348 = vmul.f32 %v346, %v346
          %v349 = vsub.f32 %v347, %v348
          %v350 = vmax.f32 %v349, 0.0
          %v351 = vadd.f32 %v350, 1e-05
          %v352 = vrsqrt.pop %v351
          %v353 = vld [vmem:[%s301] sm:$0xff]
          %v354 = vmul.f32 %v353, %v352
          %vm355 = vcmask 7168
          %356 = vst.msk [vmem:[#allocation4] sm:$0xff] %vm355, %v354
          %v357 = vld [vmem:[%s305] sm:$0xff]
          %v358 = vmul.f32 %v346, %v354
          %v359 = vsub.f32 %v357, %v358
          %360 = vst.msk [vmem:[#allocation5] sm:$0xff] %vm355, %v359
        $region56: #{tpu_custom_call.1} parent=35 // pred_fallthru
          _
        // Predicated region
        $region57: #{tpu_custom_call.1} parent=35 // pred_check
          %p361 = pneg %p339
        $region58: #{tpu_custom_call.1} parent=35 // pred_check_branch
          %363 = sbr.rel (%p361) target = $region60
        $region59: #{tpu_custom_call.1} parent=35 // pred_region
          %v364 = vld [vmem:[%s260] sm:$0xff]
          %v365 = vld [vmem:[%s260 + $0x8] sm:$0xff]
          %v366 = vld [vmem:[#allocation4] sm:$0xff]
          %368 = vset.pattern.permute.xlu0 0
          %369 = vperm.xlu0 %368, %v366
          %v370 = vpop.permute.xlu0 %369
          %v372 = vmul.f32 %v364, %v370
          %v373 = vmul.f32 %v365, %v370
          %v374 = vld [vmem:[#allocation5] sm:$0xff]
          %376 = vset.pattern.permute.xlu0 0
          %377 = vperm.xlu0 %376, %v374
          %v378 = vpop.permute.xlu0 %377
          %v380 = vadd.f32 %v372, %v378
          %v381 = vadd.f32 %v373, %v378
          %382 = vst [vmem:[%s296] sm:$0xff] %v380
          %383 = vst [vmem:[%s296 + $0x8] sm:$0xff] %v381
        $region60: #{tpu_custom_call.1} parent=35 // pred_fallthru
          _
        %s384 = sand.u32 %s167, 1
        %s385 = scalar_lea.sflag [#allocation8], %s384
        %s386 = sand.u32 %s167, 1
        %s387 = smul.addr %s386, 16
        %s388 = scalar_lea.vmem [#allocation11], %s387
        // Predicated region
        $region61: #{tpu_custom_call.1} parent=35 // pred_check
          %p389 = pneg %p177
        $region62: #{tpu_custom_call.1} parent=35 // pred_check_branch
          %391 = sbr.rel (%p389) target = $region64
        $region63: #{tpu_custom_call.1} parent=35 // pred_region
          %s392 = smul.u32 %s29, %s30
          %s393 = smul.u32 %s29, %s31
          %s394 = smul.u32 2, %s393
          %s396 = ssub.s32 256, 256
          %397 = vsyncadd %s385, %s396
          %s398 = smul.addr %s28, 2
          %s399 = sadd.s32 %s394, %s398
          %s400 = smul.addr %s392, 2
          %s401 = sadd.s32 %s399, %s400
          %s402 = smul.addr %s401, 128
          %s403 = scalar_lea.hbm %s4, %s402
          %s405 = sshll.u32 %s388, 4
          %s406 = int_to_ptr.vmem [resolvable:$true] %s405
          %408 = dma.vmem_to_hbm [thread:$0]  %s406, 256, %s403, %s385
        $region64: #{tpu_custom_call.1} parent=35 // pred_fallthru
          _
      $region36: #{tpu_custom_call.1} parent=5 // pred_fallthru
        _
      %p409 = scmp.le.s32.totalorder 2, %s17
      // Predicated region
      $region65: #{tpu_custom_call.1} parent=5 // pred_check
        %p410 = pneg %p409
      $region66: #{tpu_custom_call.1} parent=5 // pred_check_branch
        %412 = sbr.rel (%p410) target = $region68
      $region67: #{tpu_custom_call.1} parent=5 // pred_region
        %s413 = ssub.s32 %s17, 2
        // Predicated region
        $region69: #{tpu_custom_call.1} parent=67 // pred_check
          %p414 = pneg %p183
        $region70: #{tpu_custom_call.1} parent=67 // pred_check_branch
          %416 = sbr.rel (%p414) target = $region72
        $region71: #{tpu_custom_call.1} parent=67 // pred_region
          %s417 = sand.u32 %s168, 1
          %s418 = scalar_lea.sflag [#allocation8], %s417
          %s419 = sand.u32 %s168, 1
          %s420 = smul.addr %s419, 16
          %s421 = scalar_lea.vmem [#allocation11], %s420
          %422 = dma.done %s418, 256
        $region72: #{tpu_custom_call.1} parent=67 // pred_fallthru
          _
      $region68: #{tpu_custom_call.1} parent=5 // pred_fallthru
        _
    $region6: #{tpu_custom_call.1} parent=1 // loop_footer
      %s21 = sadd.s32 1, %s17
    $region7: #{tpu_custom_call.1} parent=1 // loop_footer_branch
      %16 = sbr.rel target = $region3
    $region8: #{tpu_custom_call.1} parent=1 // loop_exit
      _
    %423 = vsyncpa [#allocation7], 1
    %s424 = scalar_lea.sflag [#allocation7], 1
    %425 = vsyncpa %s424, 1
    %426 = vsyncpa [#allocation10], 1
    %427 = vsyncpa [#allocation8], 1
    %s428 = scalar_lea.sflag [#allocation8], 1
    %429 = vsyncpa %s428, 1

</llo_original>
